<compile_context>
chip_gen: v5e
topology: v5e:2x2
jax: 0.10.0
libtpu: 0.0.40
codegen_flags: <defaults>
</compile_context>

<pallas_src>
import functools

import jax
import jax.numpy as jnp
from jax.experimental import pallas as pl
from jax.experimental.pallas import tpu as pltpu

AUDIO_FEAT = 960                    # Mobilenet_Encoder('mn10_as') feature dim
PROJ_DIM = 384                      # proj_audio out
IMU_DIM = 384                       # TransformerEncoder out
FUSED_DIM = PROJ_DIM + IMU_DIM      # 768 = fc in
NUM_CLASS = 91                      # default num_class
NUM_CLASS_PAD = 128                 # lane-padded fc out dim


def _round_up(x, m):
    return (x + m - 1) // m * m


def _head_kernel(audio_ref, imu_ref, w_audio_ref, w_imu_ref, b_ref, out_ref):
    # Cast activations to bf16 in-kernel (VPU slots are idle; saves a separate
    # XLA cast pass over HBM in the wrapper).
    a = audio_ref[...].astype(jnp.bfloat16)
    i = imu_ref[...].astype(jnp.bfloat16)
    # Folded head: out = audio @ (Wp@Wfa) + imu @ Wfi + (bp@Wfa + bf)
    out_ref[...] = (
        jnp.dot(a, w_audio_ref[...], preferred_element_type=jnp.float32)
        + jnp.dot(i, w_imu_ref[...], preferred_element_type=jnp.float32)
        + b_ref[...]
    )


def prepare_params(raw):
    """One-time parameter prep.

    raw holds PyTorch-layout f32 tensors:
      proj_audio.weight (384, 960), proj_audio.bias (384,)
      fc.weight (91, 768),          fc.bias (91,)
    Folds proj_audio into fc (exact: purely linear composition), lane-pads the
    class dim 91 -> 128, and casts weights to bf16 (biases stay f32).
    """
    w_proj = raw["proj_audio.weight"].T.astype(jnp.float32)            # (960, 384)
    b_proj = raw["proj_audio.bias"].astype(jnp.float32)                # (384,)

    w_fc = raw["fc.weight"].T.astype(jnp.float32)                      # (768, 91)
    w_fc = jnp.pad(w_fc, ((0, 0), (0, NUM_CLASS_PAD - NUM_CLASS)))     # (768, 128)
    b_fc = jnp.pad(raw["fc.bias"].astype(jnp.float32),
                   (0, NUM_CLASS_PAD - NUM_CLASS))                     # (128,)

    w_fc_a = w_fc[:PROJ_DIM]                                           # (384, 128)
    w_fc_i = w_fc[PROJ_DIM:]                                           # (384, 128)

    # Fold: concat(a @ Wp + bp, i) @ Wfc + bfc
    #     == a @ (Wp @ Wfa) + i @ Wfi + (bp @ Wfa + bfc)
    w_audio = (w_proj @ w_fc_a).astype(jnp.bfloat16)                   # (960, 128)
    b_total = (b_proj @ w_fc_a + b_fc).reshape(1, NUM_CLASS_PAD)       # (1, 128) f32

    return {
        "w_audio": w_audio,                                            # bf16 (960,128)
        "w_imu": w_fc_i.astype(jnp.bfloat16),                          # bf16 (384,128)
        "b_total": b_total,                                            # f32  (1,128)
    }


@functools.partial(jax.jit, static_argnames=("block_m",))
def multimodal_head(audio_feature, imu_feature, params, *, block_m=1024):
    """Pallas implementation of Multi_modal_model.forward head (sequence=0).

    audio_feature: (B, 960) f32, imu_feature: (B, 384) f32.
    Returns logits of shape (B, NUM_CLASS) in float32.
    """
    B = audio_feature.shape[0]
    block_m = max(16, _round_up(block_m, 16))
    # Batch tile: at most block_m rows, at least 2 grid steps for moderate B
    # (v7x megacore gets both TensorCores busy), never larger than needed for
    # tiny batches. Always a multiple of 8 (f32 sublane tile).
    tm = min(block_m,
             _round_up(pl.cdiv(B, 2), 16),
             _round_up(B, 8))
    grid = (pl.cdiv(B, tm),)   # no jnp.pad: Pallas masks the ragged last block

    grid_spec = pltpu.PrefetchScalarGridSpec(
        num_scalar_prefetch=0,
        grid=grid,
        in_specs=[
            # activations (f32, cast to bf16 in-kernel): tiled over the batch
            pl.BlockSpec((tm, AUDIO_FEAT), lambda m: (m, 0)),
            pl.BlockSpec((tm, IMU_DIM), lambda m: (m, 0)),
            # weights / bias: resident across the batch grid
            pl.BlockSpec((AUDIO_FEAT, NUM_CLASS_PAD), lambda m: (0, 0)),
            pl.BlockSpec((IMU_DIM, NUM_CLASS_PAD), lambda m: (0, 0)),
            pl.BlockSpec((1, NUM_CLASS_PAD), lambda m: (0, 0)),
        ],
        out_specs=pl.BlockSpec((tm, NUM_CLASS_PAD), lambda m: (m, 0)),
    )

    logits_padded = pl.pallas_call(
        _head_kernel,
        out_shape=jax.ShapeDtypeStruct((B, NUM_CLASS_PAD), jnp.float32),
        grid_spec=grid_spec,
        compiler_params=pltpu.CompilerParams(
            dimension_semantics=("parallel",),
            vmem_limit_bytes=32 * 1024 * 1024,
        ),
    )(audio_feature, imu_feature,
      params["w_audio"], params["w_imu"], params["b_total"])

    return logits_padded[:, :NUM_CLASS]


def reference_head_f32(audio_feature, imu_feature, raw):
    """Pure-JAX f32 reference mirroring the PyTorch forward (sequence=0)."""
    audio = audio_feature @ raw["proj_audio.weight"].T + raw["proj_audio.bias"]
    feature = jnp.concatenate([audio, imu_feature], axis=1)
    return feature @ raw["fc.weight"].T + raw["fc.bias"]


def reference_head_bf16(audio_feature, imu_feature, params):
    """Precision-matched reference (folded bf16 weights, f32 accumulation)."""
    a = audio_feature.astype(jnp.bfloat16)
    i = imu_feature.astype(jnp.bfloat16)
    logits = (jnp.dot(a, params["w_audio"], preferred_element_type=jnp.float32)
              + jnp.dot(i, params["w_imu"], preferred_element_type=jnp.float32)
              + params["b_total"])
    return logits[:, :NUM_CLASS]


def init_raw_params(key):
    k1, k2, k3, k4 = jax.random.split(key, 4)
    return {
        # PyTorch nn.Linear layout: (out_features, in_features)
        "proj_audio.weight": jax.random.normal(k1, (PROJ_DIM, AUDIO_FEAT),
                                               jnp.float32) / jnp.sqrt(AUDIO_FEAT),
        "proj_audio.bias": jax.random.normal(k2, (PROJ_DIM,), jnp.float32) * 0.01,
        "fc.weight": jax.random.normal(k3, (NUM_CLASS, FUSED_DIM),
                                       jnp.float32) / jnp.sqrt(FUSED_DIM),
        "fc.bias": jax.random.normal(k4, (NUM_CLASS,), jnp.float32) * 0.01,
    }


if __name__ == "__main__":
    key = jax.random.PRNGKey(0)
    k_a, k_i, k_p = jax.random.split(key, 3)

    B = 8  # small batch
    # Encoder outputs (the encoders themselves are external / not defined):
    audio_feature = jax.random.normal(k_a, (B, AUDIO_FEAT), jnp.float32)
    imu_feature = jax.random.normal(k_i, (B, IMU_DIM), jnp.float32)

    raw = init_raw_params(k_p)
    params = prepare_params(raw)

    logits = multimodal_head(audio_feature, imu_feature, params)
    logits = jax.block_until_ready(logits)
    assert logits.shape == (B, NUM_CLASS)

    # Exact-ish check against a precision-matched reference (folded bf16
    # weights, f32 accumulation), plus a loose check against pure-f32 math.
    ref_bf16 = reference_head_bf16(audio_feature, imu_feature, params)
    ref_f32 = reference_head_f32(audio_feature, imu_feature, raw)
    assert jnp.allclose(logits, ref_bf16, atol=5e-3, rtol=5e-3), \
        "mismatch vs precision-matched reference"
    assert jnp.allclose(logits, ref_f32, atol=1e-1, rtol=1e-1), \
        "mismatch vs f32 reference beyond bf16 tolerance"

    print("KERNEL_OK")
</pallas_src>

<mosaic_0001>
module attributes {stable_mosaic.version = 11 : i64} {
  func.func @_head_kernel(%arg0: i32, %arg1: memref<8x960xf32, #tpu.memory_space<vmem>>, %arg2: memref<8x384xf32, #tpu.memory_space<vmem>>, %arg3: memref<960x128xbf16, #tpu.memory_space<vmem>>, %arg4: memref<384x128xbf16, #tpu.memory_space<vmem>>, %arg5: memref<1x128xf32, #tpu.memory_space<vmem>>, %arg6: memref<8x128xf32, #tpu.memory_space<vmem>>) attributes {dimension_semantics = [#tpu.dimension_semantics<parallel>], iteration_bounds = array<i64: 1>, scalar_prefetch = 0 : i64, scratch_operands = 0 : i64, tpu.core_type = #tpu.core_type<tc>, window_params = [{transform_indices = @transform_0, window_bounds = array<i64: 8, 960>}, {transform_indices = @transform_1, window_bounds = array<i64: 8, 384>}, {pipeline_mode = #tpu.pipeline_mode<synchronous>, transform_indices = @transform_2, window_bounds = array<i64: 960, 128>}, {pipeline_mode = #tpu.pipeline_mode<synchronous>, transform_indices = @transform_3, window_bounds = array<i64: 384, 128>}, {pipeline_mode = #tpu.pipeline_mode<synchronous>, transform_indices = @transform_4, window_bounds = array<i64: 1, 128>}, {transform_indices = @transform_5, window_bounds = array<i64: 8, 128>}]} {
    %c0 = arith.constant 0 : index
    %c0_0 = arith.constant 0 : index
    %0 = vector.load %arg1[%c0, %c0_0] : memref<8x960xf32, #tpu.memory_space<vmem>>, vector<8x960xf32>
    %1 = arith.truncf %0 : vector<8x960xf32> to vector<8x960xbf16>
    %c0_1 = arith.constant 0 : index
    %c0_2 = arith.constant 0 : index
    %2 = vector.load %arg2[%c0_1, %c0_2] : memref<8x384xf32, #tpu.memory_space<vmem>>, vector<8x384xf32>
    %3 = arith.truncf %2 : vector<8x384xf32> to vector<8x384xbf16>
    %c0_3 = arith.constant 0 : index
    %c0_4 = arith.constant 0 : index
    %4 = vector.load %arg3[%c0_3, %c0_4] : memref<960x128xbf16, #tpu.memory_space<vmem>>, vector<960x128xbf16>
    %cst = arith.constant dense<0.000000e+00> : vector<8x128xf32>
    %5 = tpu.matmul %1, %4, %cst {dimension_numbers = #tpu.dot_dimension_numbers<[1], [0], [0], [1], [0, 0, 1, 1], [], []>} : vector<8x960xbf16>, vector<960x128xbf16>, vector<8x128xf32> -> vector<8x128xf32>
    %c0_5 = arith.constant 0 : index
    %c0_6 = arith.constant 0 : index
    %6 = vector.load %arg4[%c0_5, %c0_6] : memref<384x128xbf16, #tpu.memory_space<vmem>>, vector<384x128xbf16>
    %cst_7 = arith.constant dense<0.000000e+00> : vector<8x128xf32>
    %7 = tpu.matmul %3, %6, %cst_7 {dimension_numbers = #tpu.dot_dimension_numbers<[1], [0], [0], [1], [0, 0, 1, 1], [], []>} : vector<8x384xbf16>, vector<384x128xbf16>, vector<8x128xf32> -> vector<8x128xf32>
    %8 = arith.addf %5, %7 : vector<8x128xf32>
    %c0_8 = arith.constant 0 : index
    %c0_9 = arith.constant 0 : index
    %9 = vector.load %arg5[%c0_8, %c0_9] : memref<1x128xf32, #tpu.memory_space<vmem>>, vector<1x128xf32>
    %10 = vector.broadcast %9 : vector<1x128xf32> to vector<8x128xf32>
    %11 = arith.addf %8, %10 : vector<8x128xf32>
    %c0_10 = arith.constant 0 : index
    %c0_11 = arith.constant 0 : index
    %12 = vector.load %arg6[%c0_10, %c0_11] : memref<8x128xf32, #tpu.memory_space<vmem>>, vector<8x128xf32>
    tpu.vector_store %arg6[%c0_10, %c0_11], %11 {strides = array<i32>} : memref<8x128xf32, #tpu.memory_space<vmem>>, vector<8x128xf32>,
    return
  }
  func.func @transform_0(%arg0: i32) -> (i32, i32) {
    %c0_i32 = arith.constant 0 : i32
    %c0_i32_0 = arith.constant 0 : i32
    return %arg0, %c0_i32 : i32, i32
  }
  func.func @transform_1(%arg0: i32) -> (i32, i32) {
    %c0_i32 = arith.constant 0 : i32
    %c0_i32_0 = arith.constant 0 : i32
    return %arg0, %c0_i32 : i32, i32
  }
  func.func @transform_2(%arg0: i32) -> (i32, i32) {
    %c0_i32 = arith.constant 0 : i32
    %c0_i32_0 = arith.constant 0 : i32
    %c0_i32_1 = arith.constant 0 : i32
    return %c0_i32, %c0_i32_0 : i32, i32
  }
  func.func @transform_3(%arg0: i32) -> (i32, i32) {
    %c0_i32 = arith.constant 0 : i32
    %c0_i32_0 = arith.constant 0 : i32
    %c0_i32_1 = arith.constant 0 : i32
    return %c0_i32, %c0_i32_0 : i32, i32
  }
  func.func @transform_4(%arg0: i32) -> (i32, i32) {
    %c0_i32 = arith.constant 0 : i32
    %c0_i32_0 = arith.constant 0 : i32
    %c0_i32_1 = arith.constant 0 : i32
    return %c0_i32, %c0_i32_0 : i32, i32
  }
  func.func @transform_5(%arg0: i32) -> (i32, i32) {
    %c0_i32 = arith.constant 0 : i32
    %c0_i32_0 = arith.constant 0 : i32
    return %arg0, %c0_i32 : i32, i32
  }
}

</mosaic_0001>

<llo_original>
// kernel: multimodal_head.1
$region0: #{multimodal_head.1}
  #allocation0 [shape = 'u32[]', space=smem, size = 0x4, offset = 0x4, fixed_abs, tag = 'smem constant byte address 0x4 - core index']
  #allocation1 [shape = 'u32[72,128]{1,0:T(1,128)}', space=vmem, size = 0x9000, scoped, tag = 'internal scratch']
  %s0 = inlined_call_operand.hbm [shape: f32[8,960], index: 0, kind: input, shape index: {}]
  %s1 = inlined_call_operand.hbm [shape: f32[8,384], index: 1, kind: input, shape index: {}]
  %s2 = inlined_call_operand.hbm [shape: bf16[960,128], index: 2, kind: input, shape index: {}]
  %s3 = inlined_call_operand.hbm [shape: bf16[384,128], index: 3, kind: input, shape index: {}]
  %s4 = inlined_call_operand.vmem [shape: f32[1,128], index: 4, kind: input, shape index: {}]
  %s5 = inlined_call_operand.hbm [shape: f32[8,128], index: 5, kind: output, shape index: {}]
  %s6 = sld [smem:[#allocation0]]
  $region46: #{multimodal_head.1} parent=0
    _
  %s8 = ssub.s32 1, %s6
  %s9 = scalar_select 0, %s8, %s6
  $region1: #{multimodal_head.1} parent=0
    #allocation2 [shape = 'u8[32768]{0}', space=vmem, size = 0x8000, scoped, tag = 'input window, operand 0, single buffered']
    #allocation3 [shape = 's32[1]{0}', space=sflag, size = 0x4, scoped, tag = 'scoped memory for multimodal_head.1']
    #allocation4 [shape = 's32[1]{0}', space=sflag, size = 0x4, scoped, tag = 'scoped memory for multimodal_head.1']
    #allocation5 [shape = 'u8[12288]{0}', space=vmem, size = 0x3000, scoped, tag = 'input window, operand 1, single buffered']
    #allocation6 [shape = 's32[1]{0}', space=sflag, size = 0x4, scoped, tag = 'scoped memory for multimodal_head.1']
    #allocation7 [shape = 'u8[245760]{0}', space=vmem, size = 0x3c000, scoped, tag = 'input window, operand 2, single buffered']
    #allocation8 [shape = 'u8[98304]{0}', space=vmem, size = 0x18000, scoped, tag = 'input window, operand 3, single buffered']
    #allocation9 [shape = 's32[1]{0}', space=sflag, size = 0x4, scoped, tag = 'scoped memory for multimodal_head.1']
    #allocation10 [shape = 'u8[4096]{0}', space=vmem, size = 0x1000, scoped, tag = 'output window, operand 0, single buffered']
    %10 = vsyncpa [#allocation3], 0
    %11 = vsyncpa [#allocation6], 0
    %12 = vsyncpa [#allocation9], 0
    %13 = vsyncpa [#allocation4], 0
    // Predicated region
    $region2: #{multimodal_head.1} parent=1 // pred_check
      _
    $region3: #{multimodal_head.1} parent=1 // pred_check_branch
      %15 = sbr.rel (0) target = $region5
    $region4: #{multimodal_head.1} parent=1 // pred_region
      %17 = vsyncadd [#allocation3], 0
      %s19 = sshll.u32 %s0, 4
      %s20 = int_to_ptr.hbm [resolvable:$true] %s19
      %s21 = sshll.u32 [#allocation2], 4
      %s22 = int_to_ptr.vmem [resolvable:$true] %s21
      %24 = dma.hbm_to_vmem [thread:$0]  %s20, 1024, %s22, [#allocation3]
    $region5: #{multimodal_head.1} parent=1 // pred_fallthru
      _
    // Predicated region
    $region6: #{multimodal_head.1} parent=1 // pred_check
      _
    $region7: #{multimodal_head.1} parent=1 // pred_check_branch
      %26 = sbr.rel (0) target = $region9
    $region8: #{multimodal_head.1} parent=1 // pred_region
      %28 = vsyncadd [#allocation6], 0
      %s30 = sshll.u32 %s1, 4
      %s31 = int_to_ptr.hbm [resolvable:$true] %s30
      %s32 = sshll.u32 [#allocation5], 4
      %s33 = int_to_ptr.vmem [resolvable:$true] %s32
      %35 = dma.hbm_to_vmem [thread:$0]  %s31, 384, %s33, [#allocation6]
    $region9: #{multimodal_head.1} parent=1 // pred_fallthru
      _
    // Predicated region
    $region10: #{multimodal_head.1} parent=1 // pred_check
      _
    $region11: #{multimodal_head.1} parent=1 // pred_check_branch
      %37 = sbr.rel (0) target = $region13
    $region12: #{multimodal_head.1} parent=1 // pred_region
      %39 = vsyncadd [#allocation6], 0
      %s40 = sshll.u32 %s2, 4
      %s41 = int_to_ptr.hbm [resolvable:$true] %s40
      %s42 = sshll.u32 [#allocation7], 4
      %s43 = int_to_ptr.vmem [resolvable:$true] %s42
      %48 = dma.hbm_to_vmem [thread:$0]  %s41, 7680, %s43, [#allocation6], 64, 64, 4
    $region13: #{multimodal_head.1} parent=1 // pred_fallthru
      _
    // Predicated region
    $region14: #{multimodal_head.1} parent=1 // pred_check
      _
    $region15: #{multimodal_head.1} parent=1 // pred_check_branch
      %50 = sbr.rel (0) target = $region17
    $region16: #{multimodal_head.1} parent=1 // pred_region
      %52 = vsyncadd [#allocation9], 0
      %s53 = sshll.u32 %s3, 4
      %s54 = int_to_ptr.hbm [resolvable:$true] %s53
      %s55 = sshll.u32 [#allocation8], 4
      %s56 = int_to_ptr.vmem [resolvable:$true] %s55
      %61 = dma.hbm_to_vmem [thread:$0]  %s54, 3072, %s56, [#allocation9], 64, 64, 4
    $region17: #{multimodal_head.1} parent=1 // pred_fallthru
      _
    // Predicated region
    $region18: #{multimodal_head.1} parent=1 // pred_check
      _
    $region19: #{multimodal_head.1} parent=1 // pred_check_branch
      %63 = sbr.rel (0) target = $region21
    $region20: #{multimodal_head.1} parent=1 // pred_region
      _
    $region21: #{multimodal_head.1} parent=1 // pred_fallthru
      _
    // Predicated region
    $region22: #{multimodal_head.1} parent=1 // pred_check
      _
    $region23: #{multimodal_head.1} parent=1 // pred_check_branch
      %65 = sbr.rel (0) target = $region25
    $region24: #{multimodal_head.1} parent=1 // pred_region
      %67 = dma.done [#allocation3], 1024
    $region25: #{multimodal_head.1} parent=1 // pred_fallthru
      _
    // Predicated region
    $region26: #{multimodal_head.1} parent=1 // pred_check
      _
    $region27: #{multimodal_head.1} parent=1 // pred_check_branch
      %69 = sbr.rel (0) target = $region29
    $region28: #{multimodal_head.1} parent=1 // pred_region
      %71 = dma.done [#allocation6], 384
    $region29: #{multimodal_head.1} parent=1 // pred_fallthru
      _
    // Predicated region
    $region30: #{multimodal_head.1} parent=1 // pred_check
      _
    $region31: #{multimodal_head.1} parent=1 // pred_check_branch
      %73 = sbr.rel (0) target = $region33
    $region32: #{multimodal_head.1} parent=1 // pred_region
      %75 = dma.done [#allocation6], 7680
    $region33: #{multimodal_head.1} parent=1 // pred_fallthru
      _
    // Predicated region
    $region34: #{multimodal_head.1} parent=1 // pred_check
      _
    $region35: #{multimodal_head.1} parent=1 // pred_check_branch
      %77 = sbr.rel (0) target = $region37
    $region36: #{multimodal_head.1} parent=1 // pred_region
      %79 = dma.done [#allocation9], 3072
    $region37: #{multimodal_head.1} parent=1 // pred_fallthru
      _
    %v81 = vld [vmem:[#allocation2] sm:$0xff]
    %v82 = vld [vmem:[#allocation2 + $0x8] sm:$0xff]
    %v83 = vld [vmem:[#allocation2 + $0x10] sm:$0xff]
    %v84 = vld [vmem:[#allocation2 + $0x18] sm:$0xff]
    %v85 = vld [vmem:[#allocation2 + $0x20] sm:$0xff]
    %v86 = vld [vmem:[#allocation2 + $0x28] sm:$0xff]
    %v87 = vld [vmem:[#allocation2 + $0x30] sm:$0xff]
    %v88 = vld [vmem:[#allocation2 + $0x38] sm:$0xff]
    %v89 = vpack.c.bf16 %v81, %v81
    %v90 = vpack.c.bf16 %v82, %v82
    %v91 = vpack.c.bf16 %v83, %v83
    %v92 = vpack.c.bf16 %v84, %v84
    %v93 = vpack.c.bf16 %v85, %v85
    %v94 = vpack.c.bf16 %v86, %v86
    %v95 = vpack.c.bf16 %v87, %v87
    %v96 = vpack.c.bf16 %v88, %v88
    %v97 = vld [vmem:[#allocation5] sm:$0xff]
    %v98 = vld [vmem:[#allocation5 + $0x8] sm:$0xff]
    %v99 = vld [vmem:[#allocation5 + $0x10] sm:$0xff]
    %v100 = vpack.c.bf16 %v97, %v97
    %v101 = vpack.c.bf16 %v98, %v98
    %v102 = vpack.c.bf16 %v99, %v99
    %v103 = vld [vmem:[#allocation7] sm:$0xf]
    %v104 = vld [vmem:[#allocation7 + $0x4] sm:$0xf]
    %v105 = vld [vmem:[#allocation7 + $0x8] sm:$0xf]
    %v106 = vld [vmem:[#allocation7 + $0xc] sm:$0xf]
    %v107 = vld [vmem:[#allocation7 + $0x10] sm:$0xf]
    %v108 = vld [vmem:[#allocation7 + $0x14] sm:$0xf]
    %v109 = vld [vmem:[#allocation7 + $0x18] sm:$0xf]
    %v110 = vld [vmem:[#allocation7 + $0x1c] sm:$0xf]
    %v111 = vld [vmem:[#allocation7 + $0x20] sm:$0xf]
    %v112 = vld [vmem:[#allocation7 + $0x24] sm:$0xf]
    %v113 = vld [vmem:[#allocation7 + $0x28] sm:$0xf]
    %v114 = vld [vmem:[#allocation7 + $0x2c] sm:$0xf]
    %v115 = vld [vmem:[#allocation7 + $0x30] sm:$0xf]
    %v116 = vld [vmem:[#allocation7 + $0x34] sm:$0xf]
    %v117 = vld [vmem:[#allocation7 + $0x38] sm:$0xf]
    %v118 = vld [vmem:[#allocation7 + $0x3c] sm:$0xf]
    %v119 = vld [vmem:[#allocation7 + $0x40] sm:$0xf]
    %v120 = vld [vmem:[#allocation7 + $0x44] sm:$0xf]
    %v121 = vld [vmem:[#allocation7 + $0x48] sm:$0xf]
    %v122 = vld [vmem:[#allocation7 + $0x4c] sm:$0xf]
    %v123 = vld [vmem:[#allocation7 + $0x50] sm:$0xf]
    %v124 = vld [vmem:[#allocation7 + $0x54] sm:$0xf]
    %v125 = vld [vmem:[#allocation7 + $0x58] sm:$0xf]
    %v126 = vld [vmem:[#allocation7 + $0x5c] sm:$0xf]
    %v127 = vld [vmem:[#allocation7 + $0x60] sm:$0xf]
    %v128 = vld [vmem:[#allocation7 + $0x64] sm:$0xf]
    %v129 = vld [vmem:[#allocation7 + $0x68] sm:$0xf]
    %v130 = vld [vmem:[#allocation7 + $0x6c] sm:$0xf]
    %v131 = vld [vmem:[#allocation7 + $0x70] sm:$0xf]
    %v132 = vld [vmem:[#allocation7 + $0x74] sm:$0xf]
    %v133 = vld [vmem:[#allocation7 + $0x78] sm:$0xf]
    %v134 = vld [vmem:[#allocation7 + $0x7c] sm:$0xf]
    %v135 = vld [vmem:[#allocation7 + $0x80] sm:$0xf]
    %v136 = vld [vmem:[#allocation7 + $0x84] sm:$0xf]
    %v137 = vld [vmem:[#allocation7 + $0x88] sm:$0xf]
    %v138 = vld [vmem:[#allocation7 + $0x8c] sm:$0xf]
    %v139 = vld [vmem:[#allocation7 + $0x90] sm:$0xf]
    %v140 = vld [vmem:[#allocation7 + $0x94] sm:$0xf]
    %v141 = vld [vmem:[#allocation7 + $0x98] sm:$0xf]
    %v142 = vld [vmem:[#allocation7 + $0x9c] sm:$0xf]
    %v143 = vld [vmem:[#allocation7 + $0xa0] sm:$0xf]
    %v144 = vld [vmem:[#allocation7 + $0xa4] sm:$0xf]
    %v145 = vld [vmem:[#allocation7 + $0xa8] sm:$0xf]
    %v146 = vld [vmem:[#allocation7 + $0xac] sm:$0xf]
    %v147 = vld [vmem:[#allocation7 + $0xb0] sm:$0xf]
    %v148 = vld [vmem:[#allocation7 + $0xb4] sm:$0xf]
    %v149 = vld [vmem:[#allocation7 + $0xb8] sm:$0xf]
    %v150 = vld [vmem:[#allocation7 + $0xbc] sm:$0xf]
    %v151 = vld [vmem:[#allocation7 + $0xc0] sm:$0xf]
    %v152 = vld [vmem:[#allocation7 + $0xc4] sm:$0xf]
    %v153 = vld [vmem:[#allocation7 + $0xc8] sm:$0xf]
    %v154 = vld [vmem:[#allocation7 + $0xcc] sm:$0xf]
    %v155 = vld [vmem:[#allocation7 + $0xd0] sm:$0xf]
    %v156 = vld [vmem:[#allocation7 + $0xd4] sm:$0xf]
    %v157 = vld [vmem:[#allocation7 + $0xd8] sm:$0xf]
    %v158 = vld [vmem:[#allocation7 + $0xdc] sm:$0xf]
    %v159 = vld [vmem:[#allocation7 + $0xe0] sm:$0xf]
    %v160 = vld [vmem:[#allocation7 + $0xe4] sm:$0xf]
    %v161 = vld [vmem:[#allocation7 + $0xe8] sm:$0xf]
    %v162 = vld [vmem:[#allocation7 + $0xec] sm:$0xf]
    %v163 = vld [vmem:[#allocation7 + $0xf0] sm:$0xf]
    %v164 = vld [vmem:[#allocation7 + $0xf4] sm:$0xf]
    %v165 = vld [vmem:[#allocation7 + $0xf8] sm:$0xf]
    %v166 = vld [vmem:[#allocation7 + $0xfc] sm:$0xf]
    %v167 = vld [vmem:[#allocation7 + $0x100] sm:$0xf]
    %v168 = vld [vmem:[#allocation7 + $0x104] sm:$0xf]
    %v169 = vld [vmem:[#allocation7 + $0x108] sm:$0xf]
    %v170 = vld [vmem:[#allocation7 + $0x10c] sm:$0xf]
    %v171 = vld [vmem:[#allocation7 + $0x110] sm:$0xf]
    %v172 = vld [vmem:[#allocation7 + $0x114] sm:$0xf]
    %v173 = vld [vmem:[#allocation7 + $0x118] sm:$0xf]
    %v174 = vld [vmem:[#allocation7 + $0x11c] sm:$0xf]
    %v175 = vld [vmem:[#allocation7 + $0x120] sm:$0xf]
    %v176 = vld [vmem:[#allocation7 + $0x124] sm:$0xf]
    %v177 = vld [vmem:[#allocation7 + $0x128] sm:$0xf]
    %v178 = vld [vmem:[#allocation7 + $0x12c] sm:$0xf]
    %v179 = vld [vmem:[#allocation7 + $0x130] sm:$0xf]
    %v180 = vld [vmem:[#allocation7 + $0x134] sm:$0xf]
    %v181 = vld [vmem:[#allocation7 + $0x138] sm:$0xf]
    %v182 = vld [vmem:[#allocation7 + $0x13c] sm:$0xf]
    %v183 = vld [vmem:[#allocation7 + $0x140] sm:$0xf]
    %v184 = vld [vmem:[#allocation7 + $0x144] sm:$0xf]
    %v185 = vld [vmem:[#allocation7 + $0x148] sm:$0xf]
    %v186 = vld [vmem:[#allocation7 + $0x14c] sm:$0xf]
    %v187 = vld [vmem:[#allocation7 + $0x150] sm:$0xf]
    %v188 = vld [vmem:[#allocation7 + $0x154] sm:$0xf]
    %v189 = vld [vmem:[#allocation7 + $0x158] sm:$0xf]
    %v190 = vld [vmem:[#allocation7 + $0x15c] sm:$0xf]
    %v191 = vld [vmem:[#allocation7 + $0x160] sm:$0xf]
    %v192 = vld [vmem:[#allocation7 + $0x164] sm:$0xf]
    %v193 = vld [vmem:[#allocation7 + $0x168] sm:$0xf]
    %v194 = vld [vmem:[#allocation7 + $0x16c] sm:$0xf]
    %v195 = vld [vmem:[#allocation7 + $0x170] sm:$0xf]
    %v196 = vld [vmem:[#allocation7 + $0x174] sm:$0xf]
    %v197 = vld [vmem:[#allocation7 + $0x178] sm:$0xf]
    %v198 = vld [vmem:[#allocation7 + $0x17c] sm:$0xf]
    %v199 = vld [vmem:[#allocation7 + $0x180] sm:$0xf]
    %v200 = vld [vmem:[#allocation7 + $0x184] sm:$0xf]
    %v201 = vld [vmem:[#allocation7 + $0x188] sm:$0xf]
    %v202 = vld [vmem:[#allocation7 + $0x18c] sm:$0xf]
    %v203 = vld [vmem:[#allocation7 + $0x190] sm:$0xf]
    %v204 = vld [vmem:[#allocation7 + $0x194] sm:$0xf]
    %v205 = vld [vmem:[#allocation7 + $0x198] sm:$0xf]
    %v206 = vld [vmem:[#allocation7 + $0x19c] sm:$0xf]
    %v207 = vld [vmem:[#allocation7 + $0x1a0] sm:$0xf]
    %v208 = vld [vmem:[#allocation7 + $0x1a4] sm:$0xf]
    %v209 = vld [vmem:[#allocation7 + $0x1a8] sm:$0xf]
    %v210 = vld [vmem:[#allocation7 + $0x1ac] sm:$0xf]
    %v211 = vld [vmem:[#allocation7 + $0x1b0] sm:$0xf]
    %v212 = vld [vmem:[#allocation7 + $0x1b4] sm:$0xf]
    %v213 = vld [vmem:[#allocation7 + $0x1b8] sm:$0xf]
    %v214 = vld [vmem:[#allocation7 + $0x1bc] sm:$0xf]
    %v215 = vld [vmem:[#allocation7 + $0x1c0] sm:$0xf]
    %v216 = vld [vmem:[#allocation7 + $0x1c4] sm:$0xf]
    %v217 = vld [vmem:[#allocation7 + $0x1c8] sm:$0xf]
    %v218 = vld [vmem:[#allocation7 + $0x1cc] sm:$0xf]
    %v219 = vld [vmem:[#allocation7 + $0x1d0] sm:$0xf]
    %v220 = vld [vmem:[#allocation7 + $0x1d4] sm:$0xf]
    %v221 = vld [vmem:[#allocation7 + $0x1d8] sm:$0xf]
    %v222 = vld [vmem:[#allocation7 + $0x1dc] sm:$0xf]
    %v223 = vld [vmem:[#allocation8] sm:$0xf]
    %v224 = vld [vmem:[#allocation8 + $0x4] sm:$0xf]
    %v225 = vld [vmem:[#allocation8 + $0x8] sm:$0xf]
    %v226 = vld [vmem:[#allocation8 + $0xc] sm:$0xf]
    %v227 = vld [vmem:[#allocation8 + $0x10] sm:$0xf]
    %v228 = vld [vmem:[#allocation8 + $0x14] sm:$0xf]
    %v229 = vld [vmem:[#allocation8 + $0x18] sm:$0xf]
    %v230 = vld [vmem:[#allocation8 + $0x1c] sm:$0xf]
    %v231 = vld [vmem:[#allocation8 + $0x20] sm:$0xf]
    %v232 = vld [vmem:[#allocation8 + $0x24] sm:$0xf]
    %v233 = vld [vmem:[#allocation8 + $0x28] sm:$0xf]
    %v234 = vld [vmem:[#allocation8 + $0x2c] sm:$0xf]
    %v235 = vld [vmem:[#allocation8 + $0x30] sm:$0xf]
    %v236 = vld [vmem:[#allocation8 + $0x34] sm:$0xf]
    %v237 = vld [vmem:[#allocation8 + $0x38] sm:$0xf]
    %v238 = vld [vmem:[#allocation8 + $0x3c] sm:$0xf]
    %v239 = vld [vmem:[#allocation8 + $0x40] sm:$0xf]
    %v240 = vld [vmem:[#allocation8 + $0x44] sm:$0xf]
    %v241 = vld [vmem:[#allocation8 + $0x48] sm:$0xf]
    %v242 = vld [vmem:[#allocation8 + $0x4c] sm:$0xf]
    %v243 = vld [vmem:[#allocation8 + $0x50] sm:$0xf]
    %v244 = vld [vmem:[#allocation8 + $0x54] sm:$0xf]
    %v245 = vld [vmem:[#allocation8 + $0x58] sm:$0xf]
    %v246 = vld [vmem:[#allocation8 + $0x5c] sm:$0xf]
    %v247 = vld [vmem:[#allocation8 + $0x60] sm:$0xf]
    %v248 = vld [vmem:[#allocation8 + $0x64] sm:$0xf]
    %v249 = vld [vmem:[#allocation8 + $0x68] sm:$0xf]
    %v250 = vld [vmem:[#allocation8 + $0x6c] sm:$0xf]
    %v251 = vld [vmem:[#allocation8 + $0x70] sm:$0xf]
    %v252 = vld [vmem:[#allocation8 + $0x74] sm:$0xf]
    %v253 = vld [vmem:[#allocation8 + $0x78] sm:$0xf]
    %v254 = vld [vmem:[#allocation8 + $0x7c] sm:$0xf]
    %v255 = vld [vmem:[#allocation8 + $0x80] sm:$0xf]
    %v256 = vld [vmem:[#allocation8 + $0x84] sm:$0xf]
    %v257 = vld [vmem:[#allocation8 + $0x88] sm:$0xf]
    %v258 = vld [vmem:[#allocation8 + $0x8c] sm:$0xf]
    %v259 = vld [vmem:[#allocation8 + $0x90] sm:$0xf]
    %v260 = vld [vmem:[#allocation8 + $0x94] sm:$0xf]
    %v261 = vld [vmem:[#allocation8 + $0x98] sm:$0xf]
    %v262 = vld [vmem:[#allocation8 + $0x9c] sm:$0xf]
    %v263 = vld [vmem:[#allocation8 + $0xa0] sm:$0xf]
    %v264 = vld [vmem:[#allocation8 + $0xa4] sm:$0xf]
    %v265 = vld [vmem:[#allocation8 + $0xa8] sm:$0xf]
    %v266 = vld [vmem:[#allocation8 + $0xac] sm:$0xf]
    %v267 = vld [vmem:[#allocation8 + $0xb0] sm:$0xf]
    %v268 = vld [vmem:[#allocation8 + $0xb4] sm:$0xf]
    %v269 = vld [vmem:[#allocation8 + $0xb8] sm:$0xf]
    %v270 = vld [vmem:[#allocation8 + $0xbc] sm:$0xf]
    %v319 = vunpack.c.l.b16 %v223
    %v320 = vunpack.c.l.b16 %v224
    %v321 = vunpack.c.l.b16 %v225
    %v322 = vunpack.c.l.b16 %v226
    %v323 = vunpack.c.l.b16 %v227
    %v324 = vunpack.c.l.b16 %v228
    %v325 = vunpack.c.l.b16 %v229
    %v326 = vunpack.c.l.b16 %v230
    %v327 = vunpack.c.l.b16 %v231
    %v328 = vunpack.c.l.b16 %v232
    %v329 = vunpack.c.l.b16 %v233
    %v330 = vunpack.c.l.b16 %v234
    %v331 = vunpack.c.l.b16 %v235
    %v332 = vunpack.c.l.b16 %v236
    %v333 = vunpack.c.l.b16 %v237
    %v334 = vunpack.c.l.b16 %v238
    %v335 = vunpack.c.l.b16 %v239
    %v336 = vunpack.c.l.b16 %v240
    %v337 = vunpack.c.l.b16 %v241
    %v338 = vunpack.c.l.b16 %v242
    %v339 = vunpack.c.l.b16 %v243
    %v340 = vunpack.c.l.b16 %v244
    %v341 = vunpack.c.l.b16 %v245
    %v342 = vunpack.c.l.b16 %v246
    %v343 = vunpack.c.l.b16 %v247
    %v344 = vunpack.c.l.b16 %v248
    %v345 = vunpack.c.l.b16 %v249
    %v346 = vunpack.c.l.b16 %v250
    %v347 = vunpack.c.l.b16 %v251
    %v348 = vunpack.c.l.b16 %v252
    %v349 = vunpack.c.l.b16 %v253
    %v350 = vunpack.c.l.b16 %v254
    %v351 = vunpack.c.l.b16 %v255
    %v352 = vunpack.c.l.b16 %v256
    %v353 = vunpack.c.l.b16 %v257
    %v354 = vunpack.c.l.b16 %v258
    %v355 = vunpack.c.l.b16 %v259
    %v356 = vunpack.c.l.b16 %v260
    %v357 = vunpack.c.l.b16 %v261
    %v358 = vunpack.c.l.b16 %v262
    %v359 = vunpack.c.l.b16 %v263
    %v360 = vunpack.c.l.b16 %v264
    %v361 = vunpack.c.l.b16 %v265
    %v362 = vunpack.c.l.b16 %v266
    %v363 = vunpack.c.l.b16 %v267
    %v364 = vunpack.c.l.b16 %v268
    %v365 = vunpack.c.l.b16 %v269
    %v366 = vunpack.c.l.b16 %v270
    %v367 = vpack.c.b16 %v320, %v319
    %v368 = vpack.c.b16 %v322, %v321
    %v369 = vpack.c.b16 %v324, %v323
    %v370 = vpack.c.b16 %v326, %v325
    %v371 = vpack.c.b16 %v328, %v327
    %v372 = vpack.c.b16 %v330, %v329
    %v373 = vpack.c.b16 %v332, %v331
    %v374 = vpack.c.b16 %v334, %v333
    %v375 = vpack.c.b16 %v336, %v335
    %v376 = vpack.c.b16 %v338, %v337
    %v377 = vpack.c.b16 %v340, %v339
    %v378 = vpack.c.b16 %v342, %v341
    %v379 = vpack.c.b16 %v344, %v343
    %v380 = vpack.c.b16 %v346, %v345
    %v381 = vpack.c.b16 %v348, %v347
    %v382 = vpack.c.b16 %v350, %v349
    %v383 = vpack.c.b16 %v352, %v351
    %v384 = vpack.c.b16 %v354, %v353
    %v385 = vpack.c.b16 %v356, %v355
    %v386 = vpack.c.b16 %v358, %v357
    %v387 = vpack.c.b16 %v360, %v359
    %v388 = vpack.c.b16 %v362, %v361
    %v389 = vpack.c.b16 %v364, %v363
    %v390 = vpack.c.b16 %v366, %v365
    %415 = vmatpush.bf16.msra.mxu0 %v374
    %416 = vmatpush.bf16.msra.mxu0 %v373
    %417 = vmatpush.bf16.msra.mxu0 %v372
    %418 = vmatpush.bf16.msra.mxu0 %v371
    %419 = vmatpush.bf16.msra.mxu0 %v370
    %420 = vmatpush.bf16.msra.mxu0 %v369
    %421 = vmatpush.bf16.msra.mxu0 %v368
    %422 = vmatpush.bf16.msra.mxu0 %v367
    %423 = vmatmul.bf16.gmra.mxu0 %v100
    %v424 = vpop.f32.mrf.mxu0
    %v425 = vadd.f32 0.0, %v424
    %v426 = vpop.f32.mrf.mxu0
    %427 = vdwg.mxu0
    %428 = vmatpush.bf16.msra.mxu0 %v382
    %429 = vmatpush.bf16.msra.mxu0 %v381
    %430 = vmatpush.bf16.msra.mxu0 %v380
    %431 = vmatpush.bf16.msra.mxu0 %v379
    %432 = vmatpush.bf16.msra.mxu0 %v378
    %433 = vmatpush.bf16.msra.mxu0 %v377
    %434 = vmatpush.bf16.msra.mxu0 %v376
    %435 = vmatpush.bf16.msra.mxu0 %v375
    %436 = vmatmul.bf16.gmra.mxu0 %v101
    %v437 = vpop.f32.mrf.mxu0
    %v438 = vadd.f32 %v425, %v437
    %v439 = vpop.f32.mrf.mxu0
    %440 = vdwg.mxu0
    %441 = vmatpush.bf16.msra.mxu0 %v390
    %442 = vmatpush.bf16.msra.mxu0 %v389
    %443 = vmatpush.bf16.msra.mxu0 %v388
    %444 = vmatpush.bf16.msra.mxu0 %v387
    %445 = vmatpush.bf16.msra.mxu0 %v386
    %446 = vmatpush.bf16.msra.mxu0 %v385
    %447 = vmatpush.bf16.msra.mxu0 %v384
    %448 = vmatpush.bf16.msra.mxu0 %v383
    %449 = vmatmul.bf16.gmra.mxu0 %v102
    %v450 = vpop.f32.mrf.mxu0
    %v451 = vadd.f32 %v438, %v450
    %v452 = vpop.f32.mrf.mxu0
    %453 = vdwg.mxu0
    %v574 = vunpack.c.l.b16 %v103
    %v575 = vunpack.c.l.b16 %v104
    %v576 = vunpack.c.l.b16 %v105
    %v577 = vunpack.c.l.b16 %v106
    %v578 = vunpack.c.l.b16 %v107
    %v579 = vunpack.c.l.b16 %v108
    %v580 = vunpack.c.l.b16 %v109
    %v581 = vunpack.c.l.b16 %v110
    %v582 = vunpack.c.l.b16 %v111
    %v583 = vunpack.c.l.b16 %v112
    %v584 = vunpack.c.l.b16 %v113
    %v585 = vunpack.c.l.b16 %v114
    %v586 = vunpack.c.l.b16 %v115
    %v587 = vunpack.c.l.b16 %v116
    %v588 = vunpack.c.l.b16 %v117
    %v589 = vunpack.c.l.b16 %v118
    %v590 = vunpack.c.l.b16 %v119
    %v591 = vunpack.c.l.b16 %v120
    %v592 = vunpack.c.l.b16 %v121
    %v593 = vunpack.c.l.b16 %v122
    %v594 = vunpack.c.l.b16 %v123
    %v595 = vunpack.c.l.b16 %v124
    %v596 = vunpack.c.l.b16 %v125
    %v597 = vunpack.c.l.b16 %v126
    %v598 = vunpack.c.l.b16 %v127
    %v599 = vunpack.c.l.b16 %v128
    %v600 = vunpack.c.l.b16 %v129
    %v601 = vunpack.c.l.b16 %v130
    %v602 = vunpack.c.l.b16 %v131
    %v603 = vunpack.c.l.b16 %v132
    %v604 = vunpack.c.l.b16 %v133
    %v605 = vunpack.c.l.b16 %v134
    %v606 = vunpack.c.l.b16 %v135
    %v607 = vunpack.c.l.b16 %v136
    %v608 = vunpack.c.l.b16 %v137
    %v609 = vunpack.c.l.b16 %v138
    %v610 = vunpack.c.l.b16 %v139
    %v611 = vunpack.c.l.b16 %v140
    %v612 = vunpack.c.l.b16 %v141
    %v613 = vunpack.c.l.b16 %v142
    %v614 = vunpack.c.l.b16 %v143
    %v615 = vunpack.c.l.b16 %v144
    %v616 = vunpack.c.l.b16 %v145
    %v617 = vunpack.c.l.b16 %v146
    %v618 = vunpack.c.l.b16 %v147
    %v619 = vunpack.c.l.b16 %v148
    %v620 = vunpack.c.l.b16 %v149
    %v621 = vunpack.c.l.b16 %v150
    %v622 = vunpack.c.l.b16 %v151
    %v623 = vunpack.c.l.b16 %v152
    %v624 = vunpack.c.l.b16 %v153
    %v625 = vunpack.c.l.b16 %v154
    %v626 = vunpack.c.l.b16 %v155
    %v627 = vunpack.c.l.b16 %v156
    %v628 = vunpack.c.l.b16 %v157
    %v629 = vunpack.c.l.b16 %v158
    %v630 = vunpack.c.l.b16 %v159
    %v631 = vunpack.c.l.b16 %v160
    %v632 = vunpack.c.l.b16 %v161
    %v633 = vunpack.c.l.b16 %v162
    %v634 = vunpack.c.l.b16 %v163
    %v635 = vunpack.c.l.b16 %v164
    %v636 = vunpack.c.l.b16 %v165
    %v637 = vunpack.c.l.b16 %v166
    %v638 = vunpack.c.l.b16 %v167
    %v639 = vunpack.c.l.b16 %v168
    %v640 = vunpack.c.l.b16 %v169
    %v641 = vunpack.c.l.b16 %v170
    %v642 = vunpack.c.l.b16 %v171
    %v643 = vunpack.c.l.b16 %v172
    %v644 = vunpack.c.l.b16 %v173
    %v645 = vunpack.c.l.b16 %v174
    %v646 = vunpack.c.l.b16 %v175
    %v647 = vunpack.c.l.b16 %v176
    %v648 = vunpack.c.l.b16 %v177
    %v649 = vunpack.c.l.b16 %v178
    %v650 = vunpack.c.l.b16 %v179
    %v651 = vunpack.c.l.b16 %v180
    %v652 = vunpack.c.l.b16 %v181
    %v653 = vunpack.c.l.b16 %v182
    %v654 = vunpack.c.l.b16 %v183
    %v655 = vunpack.c.l.b16 %v184
    %v656 = vunpack.c.l.b16 %v185
    %v657 = vunpack.c.l.b16 %v186
    %v658 = vunpack.c.l.b16 %v187
    %v659 = vunpack.c.l.b16 %v188
    %v660 = vunpack.c.l.b16 %v189
    %v661 = vunpack.c.l.b16 %v190
    %v662 = vunpack.c.l.b16 %v191
    %v663 = vunpack.c.l.b16 %v192
    %v664 = vunpack.c.l.b16 %v193
    %v665 = vunpack.c.l.b16 %v194
    %v666 = vunpack.c.l.b16 %v195
    %v667 = vunpack.c.l.b16 %v196
    %v668 = vunpack.c.l.b16 %v197
    %v669 = vunpack.c.l.b16 %v198
    %v670 = vunpack.c.l.b16 %v199
    %v671 = vunpack.c.l.b16 %v200
    %v672 = vunpack.c.l.b16 %v201
    %v673 = vunpack.c.l.b16 %v202
    %v674 = vunpack.c.l.b16 %v203
    %v675 = vunpack.c.l.b16 %v204
    %v676 = vunpack.c.l.b16 %v205
    %v677 = vunpack.c.l.b16 %v206
    %v678 = vunpack.c.l.b16 %v207
    %v679 = vunpack.c.l.b16 %v208
    %v680 = vunpack.c.l.b16 %v209
    %v681 = vunpack.c.l.b16 %v210
    %v682 = vunpack.c.l.b16 %v211
    %v683 = vunpack.c.l.b16 %v212
    %v684 = vunpack.c.l.b16 %v213
    %v685 = vunpack.c.l.b16 %v214
    %v686 = vunpack.c.l.b16 %v215
    %v687 = vunpack.c.l.b16 %v216
    %v688 = vunpack.c.l.b16 %v217
    %v689 = vunpack.c.l.b16 %v218
    %v690 = vunpack.c.l.b16 %v219
    %v691 = vunpack.c.l.b16 %v220
    %v692 = vunpack.c.l.b16 %v221
    %v693 = vunpack.c.l.b16 %v222
    %v694 = vpack.c.b16 %v575, %v574
    %v695 = vpack.c.b16 %v577, %v576
    %v696 = vpack.c.b16 %v579, %v578
    %v697 = vpack.c.b16 %v581, %v580
    %v698 = vpack.c.b16 %v583, %v582
    %v699 = vpack.c.b16 %v585, %v584
    %v700 = vpack.c.b16 %v587, %v586
    %v701 = vpack.c.b16 %v589, %v588
    %v702 = vpack.c.b16 %v591, %v590
    %v703 = vpack.c.b16 %v593, %v592
    %v704 = vpack.c.b16 %v595, %v594
    %v705 = vpack.c.b16 %v597, %v596
    %v706 = vpack.c.b16 %v599, %v598
    %v707 = vpack.c.b16 %v601, %v600
    %v708 = vpack.c.b16 %v603, %v602
    %v709 = vpack.c.b16 %v605, %v604
    %v710 = vpack.c.b16 %v607, %v606
    %v711 = vpack.c.b16 %v609, %v608
    %v712 = vpack.c.b16 %v611, %v610
    %v713 = vpack.c.b16 %v613, %v612
    %v714 = vpack.c.b16 %v615, %v614
    %v715 = vpack.c.b16 %v617, %v616
    %v716 = vpack.c.b16 %v619, %v618
    %v717 = vpack.c.b16 %v621, %v620
    %v718 = vpack.c.b16 %v623, %v622
    %v719 = vpack.c.b16 %v625, %v624
    %v720 = vpack.c.b16 %v627, %v626
    %v721 = vpack.c.b16 %v629, %v628
    %v722 = vpack.c.b16 %v631, %v630
    %v723 = vpack.c.b16 %v633, %v632
    %v724 = vpack.c.b16 %v635, %v634
    %v725 = vpack.c.b16 %v637, %v636
    %v726 = vpack.c.b16 %v639, %v638
    %v727 = vpack.c.b16 %v641, %v640
    %v728 = vpack.c.b16 %v643, %v642
    %v729 = vpack.c.b16 %v645, %v644
    %v730 = vpack.c.b16 %v647, %v646
    %v731 = vpack.c.b16 %v649, %v648
    %v732 = vpack.c.b16 %v651, %v650
    %v733 = vpack.c.b16 %v653, %v652
    %v734 = vpack.c.b16 %v655, %v654
    %v735 = vpack.c.b16 %v657, %v656
    %v736 = vpack.c.b16 %v659, %v658
    %v737 = vpack.c.b16 %v661, %v660
    %v738 = vpack.c.b16 %v663, %v662
    %v739 = vpack.c.b16 %v665, %v664
    %v740 = vpack.c.b16 %v667, %v666
    %v741 = vpack.c.b16 %v669, %v668
    %v742 = vpack.c.b16 %v671, %v670
    %v743 = vpack.c.b16 %v673, %v672
    %v744 = vpack.c.b16 %v675, %v674
    %v745 = vpack.c.b16 %v677, %v676
    %v746 = vpack.c.b16 %v679, %v678
    %v747 = vpack.c.b16 %v681, %v680
    %v748 = vpack.c.b16 %v683, %v682
    %v749 = vpack.c.b16 %v685, %v684
    %v750 = vpack.c.b16 %v687, %v686
    %v751 = vpack.c.b16 %v689, %v688
    %v752 = vpack.c.b16 %v691, %v690
    %v753 = vpack.c.b16 %v693, %v692
    %vm814 = vcmask 523264
    %v816 = vsel %vm814, %v96, 0
    %818 = vmatpush.bf16.msra.mxu0 %v701
    %819 = vmatpush.bf16.msra.mxu0 %v700
    %820 = vmatpush.bf16.msra.mxu0 %v699
    %821 = vmatpush.bf16.msra.mxu0 %v698
    %822 = vmatpush.bf16.msra.mxu0 %v697
    %823 = vmatpush.bf16.msra.mxu0 %v696
    %824 = vmatpush.bf16.msra.mxu0 %v695
    %825 = vmatpush.bf16.msra.mxu0 %v694
    %826 = vmatmul.bf16.gmra.mxu0 %v89
    %v827 = vpop.f32.mrf.mxu0
    %v828 = vadd.f32 %v451, %v827
    %v829 = vpop.f32.mrf.mxu0
    %830 = vdwg.mxu0
    %831 = vmatpush.bf16.msra.mxu0 %v709
    %832 = vmatpush.bf16.msra.mxu0 %v708
    %833 = vmatpush.bf16.msra.mxu0 %v707
    %834 = vmatpush.bf16.msra.mxu0 %v706
    %835 = vmatpush.bf16.msra.mxu0 %v705
    %836 = vmatpush.bf16.msra.mxu0 %v704
    %837 = vmatpush.bf16.msra.mxu0 %v703
    %838 = vmatpush.bf16.msra.mxu0 %v702
    %839 = vmatmul.bf16.gmra.mxu0 %v90
    %v840 = vpop.f32.mrf.mxu0
    %v841 = vadd.f32 %v828, %v840
    %v842 = vpop.f32.mrf.mxu0
    %843 = vdwg.mxu0
    %844 = vmatpush.bf16.msra.mxu0 %v717
    %845 = vmatpush.bf16.msra.mxu0 %v716
    %846 = vmatpush.bf16.msra.mxu0 %v715
    %847 = vmatpush.bf16.msra.mxu0 %v714
    %848 = vmatpush.bf16.msra.mxu0 %v713
    %849 = vmatpush.bf16.msra.mxu0 %v712
    %850 = vmatpush.bf16.msra.mxu0 %v711
    %851 = vmatpush.bf16.msra.mxu0 %v710
    %852 = vmatmul.bf16.gmra.mxu0 %v91
    %v853 = vpop.f32.mrf.mxu0
    %v854 = vadd.f32 %v841, %v853
    %v855 = vpop.f32.mrf.mxu0
    %856 = vdwg.mxu0
    %857 = vmatpush.bf16.msra.mxu0 %v725
    %858 = vmatpush.bf16.msra.mxu0 %v724
    %859 = vmatpush.bf16.msra.mxu0 %v723
    %860 = vmatpush.bf16.msra.mxu0 %v722
    %861 = vmatpush.bf16.msra.mxu0 %v721
    %862 = vmatpush.bf16.msra.mxu0 %v720
    %863 = vmatpush.bf16.msra.mxu0 %v719
    %864 = vmatpush.bf16.msra.mxu0 %v718
    %865 = vmatmul.bf16.gmra.mxu0 %v92
    %v866 = vpop.f32.mrf.mxu0
    %v867 = vadd.f32 %v854, %v866
    %v868 = vpop.f32.mrf.mxu0
    %869 = vdwg.mxu0
    %870 = vmatpush.bf16.msra.mxu0 %v733
    %871 = vmatpush.bf16.msra.mxu0 %v732
    %872 = vmatpush.bf16.msra.mxu0 %v731
    %873 = vmatpush.bf16.msra.mxu0 %v730
    %874 = vmatpush.bf16.msra.mxu0 %v729
    %875 = vmatpush.bf16.msra.mxu0 %v728
    %876 = vmatpush.bf16.msra.mxu0 %v727
    %877 = vmatpush.bf16.msra.mxu0 %v726
    %878 = vmatmul.bf16.gmra.mxu0 %v93
    %v879 = vpop.f32.mrf.mxu0
    %v880 = vadd.f32 %v867, %v879
    %v881 = vpop.f32.mrf.mxu0
    %882 = vdwg.mxu0
    %883 = vmatpush.bf16.msra.mxu0 %v741
    %884 = vmatpush.bf16.msra.mxu0 %v740
    %885 = vmatpush.bf16.msra.mxu0 %v739
    %886 = vmatpush.bf16.msra.mxu0 %v738
    %887 = vmatpush.bf16.msra.mxu0 %v737
    %888 = vmatpush.bf16.msra.mxu0 %v736
    %889 = vmatpush.bf16.msra.mxu0 %v735
    %890 = vmatpush.bf16.msra.mxu0 %v734
    %891 = vmatmul.bf16.gmra.mxu0 %v94
    %v892 = vpop.f32.mrf.mxu0
    %v893 = vadd.f32 %v880, %v892
    %v894 = vpop.f32.mrf.mxu0
    %895 = vdwg.mxu0
    %896 = vmatpush.bf16.msra.mxu0 %v749
    %897 = vmatpush.bf16.msra.mxu0 %v748
    %898 = vmatpush.bf16.msra.mxu0 %v747
    %899 = vmatpush.bf16.msra.mxu0 %v746
    %900 = vmatpush.bf16.msra.mxu0 %v745
    %901 = vmatpush.bf16.msra.mxu0 %v744
    %902 = vmatpush.bf16.msra.mxu0 %v743
    %903 = vmatpush.bf16.msra.mxu0 %v742
    %904 = vmatmul.bf16.gmra.mxu0 %v95
    %v905 = vpop.f32.mrf.mxu0
    %v906 = vadd.f32 %v893, %v905
    %v907 = vpop.f32.mrf.mxu0
    %908 = vdwg.mxu0
    %909 = vmatpush.bf16.msra.mxu0 0
    %910 = vmatpush.bf16.msra.mxu0 0
    %911 = vmatpush.bf16.msra.mxu0 0
    %912 = vmatpush.bf16.msra.mxu0 0
    %913 = vmatpush.bf16.msra.mxu0 %v753
    %914 = vmatpush.bf16.msra.mxu0 %v752
    %915 = vmatpush.bf16.msra.mxu0 %v751
    %916 = vmatpush.bf16.msra.mxu0 %v750
    %917 = vmatmul.bf16.gmra.mxu0 %v816
    %v918 = vpop.f32.mrf.mxu0
    %v919 = vadd.f32 %v906, %v918
    %v920 = vpop.f32.mrf.mxu0
    %921 = vdwg.mxu0
    %v922 = vld [vmem:[%s4] sm:$0x1]
    %v924 = vperm.slane %v922, 0
    %v926 = vadd.f32 %v919, %v924
    %927 = vst [vmem:[#allocation10] sm:$0xff] %v926
    // Predicated region
    $region38: #{multimodal_head.1} parent=1 // pred_check
      _
    $region39: #{multimodal_head.1} parent=1 // pred_check_branch
      %929 = sbr.rel (0) target = $region41
    $region40: #{multimodal_head.1} parent=1 // pred_region
      %931 = vsyncadd [#allocation4], 0
      %s933 = sshll.u32 [#allocation10], 4
      %s934 = int_to_ptr.vmem [resolvable:$true] %s933
      %s935 = sshll.u32 %s5, 4
      %s936 = int_to_ptr.hbm [resolvable:$true] %s935
      %938 = dma.vmem_to_hbm [thread:$0]  %s934, 128, %s936, [#allocation4]
    $region41: #{multimodal_head.1} parent=1 // pred_fallthru
      _
    // Predicated region
    $region42: #{multimodal_head.1} parent=1 // pred_check
      _
    $region43: #{multimodal_head.1} parent=1 // pred_check_branch
      %940 = sbr.rel (0) target = $region45
    $region44: #{multimodal_head.1} parent=1 // pred_region
      %942 = dma.done [#allocation4], 128
    $region45: #{multimodal_head.1} parent=1 // pred_fallthru
      _
    %943 = vsyncpa [#allocation3], 1
    %944 = vsyncpa [#allocation6], 1
    %945 = vsyncpa [#allocation9], 1
    %946 = vsyncpa [#allocation4], 1

</llo_original>
